<compile_context>
chip_gen: v7x
topology: tpu7x:2x2x1
jax: 0.10.0
libtpu: 0.0.40
codegen_flags: <defaults>
</compile_context>

<pallas_src>
import functools

import jax
import jax.numpy as jnp
from jax.experimental import pallas as pl
from jax.experimental.pallas import tpu as pltpu


TM = 128       # dst-node tile (rows of A / rows of output)
TK = 256       # src-node tile (contraction dim of A @ X)
F_PAD = 128    # all feature dims lane-padded to 128


# --------------------------------------------------------------------------
# Kernel: one SAGEConv('mean') layer, grid = (dst tiles, src/contraction tiles)
# --------------------------------------------------------------------------
def _sage_layer_kernel(a_ref, x_src_ref, x_dst_ref, inv_deg_ref, w_ref, b_ref,
                       o_ref, acc_ref, h_ref):
    f_pad = x_dst_ref.shape[-1]
    k = pl.program_id(1)

    @pl.when(k == 0)
    def _():
        acc_ref[...] = jnp.zeros_like(acc_ref)

    # Partial neighbor-sum:  acc += A_tile @ X_src_tile   (bf16 A, f32 accumulate)
    acc_ref[...] += jnp.dot(a_ref[...].astype(jnp.float32), x_src_ref[...],
                            preferred_element_type=jnp.float32)

    @pl.when(k == pl.num_programs(1) - 1)
    def _():
        # mean aggregation: scale by precomputed 1/deg (hoisted out of layers)
        neigh = acc_ref[...] * inv_deg_ref[...]                  # (TM, Fp)
        # fused projection: [x_dst | neigh] @ [[W_self],[W_neigh]]  (K = 2*Fp)
        h_ref[:, :f_pad] = x_dst_ref[...]
        h_ref[:, f_pad:] = neigh
        o_ref[...] = (jnp.dot(h_ref[...], w_ref[...],
                              preferred_element_type=jnp.float32)
                      + b_ref[...]).astype(o_ref.dtype)


def sage_conv(a_bf16, inv_deg, x_pad, w_cat, bias_pad):
    """One SAGEConv('mean') layer on padded operands.

    a_bf16:  (Np, Np) bf16 0/1 adjacency (dst x src)
    inv_deg: (Np, 1)  f32 reciprocal in-degree (clamped at 1)
    x_pad:   (Np, Fp) f32 node features (lane-padded)
    w_cat:   (2*Fp, Fp) f32 = [[W_self_pad], [W_neigh_pad]]
    bias_pad:(1, Fp)  f32
    returns  (Np, Fp) f32
    """
    n_pad, f_pad = x_pad.shape
    grid = (n_pad // TM, n_pad // TK)

    flops = 2 * n_pad * n_pad * f_pad + 2 * n_pad * (2 * f_pad) * f_pad
    bytes_accessed = (a_bf16.size * 2            # bf16 adjacency
                      + x_pad.size * 4 * 2       # read as src + dst views
                      + inv_deg.size * 4
                      + w_cat.size * 4 + bias_pad.size * 4
                      + n_pad * f_pad * 4)       # output

    return pl.pallas_call(
        _sage_layer_kernel,
        out_shape=jax.ShapeDtypeStruct((n_pad, f_pad), jnp.float32),
        grid_spec=pltpu.PrefetchScalarGridSpec(
            num_scalar_prefetch=0,
            grid=grid,
            in_specs=[
                pl.BlockSpec((TM, TK), lambda m, k: (m, k)),          # A tile
                pl.BlockSpec((TK, f_pad), lambda m, k: (k, 0)),       # X src rows
                pl.BlockSpec((TM, f_pad), lambda m, k: (m, 0)),       # X dst rows
                pl.BlockSpec((TM, 1), lambda m, k: (m, 0)),           # 1/deg
                pl.BlockSpec((2 * f_pad, f_pad), lambda m, k: (0, 0)),  # W_cat (resident)
                pl.BlockSpec((1, f_pad), lambda m, k: (0, 0)),        # bias (resident)
            ],
            out_specs=pl.BlockSpec((TM, f_pad), lambda m, k: (m, 0)),
            scratch_shapes=[
                pltpu.VMEM((TM, f_pad), jnp.float32),       # A@X accumulator
                pltpu.VMEM((TM, 2 * f_pad), jnp.float32),   # [x_dst | neigh]
            ],
        ),
        compiler_params=pltpu.CompilerParams(
            dimension_semantics=("parallel", "arbitrary"),
            vmem_limit_bytes=32 * 1024 * 1024),
        cost_estimate=pl.CostEstimate(flops=flops, transcendentals=0,
                                      bytes_accessed=bytes_accessed),
    )(a_bf16, x_pad, x_pad, inv_deg, w_cat, bias_pad)


# --------------------------------------------------------------------------
# Model wrapper
# --------------------------------------------------------------------------
def _round_up(x, m):
    return ((x + m - 1) // m) * m


def _pad2(x, rows, cols):
    return jnp.pad(x, ((0, rows - x.shape[0]), (0, cols - x.shape[1])))


def init_graphsage_params(key, in_feats, hidden_feats, out_feats, num_layers):
    """Xavier-uniform W_self / W_neigh and small random bias per layer."""
    dims = [in_feats] + [hidden_feats] * (num_layers - 1) + [out_feats]
    params = []
    for i in range(num_layers):
        fi, fo = dims[i], dims[i + 1]
        key, k1, k2, k3 = jax.random.split(key, 4)
        bound = (6.0 / (fi + fo)) ** 0.5
        w_self = jax.random.uniform(k1, (fi, fo), jnp.float32, -bound, bound)
        w_neigh = jax.random.uniform(k2, (fi, fo), jnp.float32, -bound, bound)
        bias = jax.random.uniform(k3, (fo,), jnp.float32, -0.1, 0.1)
        params.append((w_self, w_neigh, bias))
    return params


def _prep_layer(w_self, w_neigh, bias, f_pad):
    """Concatenate + lane-pad weights: y = [x | neigh] @ w_cat + bias."""
    fi, fo = w_self.shape
    w_cat = jnp.zeros((2 * f_pad, f_pad), jnp.float32)
    w_cat = w_cat.at[:fi, :fo].set(w_self)
    w_cat = w_cat.at[f_pad:f_pad + fi, :fo].set(w_neigh)
    b = jnp.zeros((1, f_pad), jnp.float32).at[0, :fo].set(bias)
    return w_cat, b


@jax.jit
def graphsage_forward(a, x, params):
    """a: (N,N) f32 0/1 dense adjacency (row i = in-neighbors of node i),
       x: (N,Fin) f32 node features, params: tuple of (W_self, W_neigh, bias)."""
    n = a.shape[0]
    n_pad = _round_up(n, max(TM, TK))
    f_pad = F_PAD

    a_pad = _pad2(a.astype(jnp.float32), n_pad, n_pad)
    # degree normalization hoisted out of the per-layer kernel (computed once)
    deg = jnp.sum(a_pad, axis=-1, keepdims=True)
    inv_deg = 1.0 / jnp.maximum(deg, 1.0)
    a_bf16 = a_pad.astype(jnp.bfloat16)          # 0/1 values are exact in bf16

    h = _pad2(x.astype(jnp.float32), n_pad, f_pad)

    f_out = None
    for (w_self, w_neigh, bias) in params:
        w_cat, b = _prep_layer(w_self, w_neigh, bias, f_pad)
        h = sage_conv(a_bf16, inv_deg, h, w_cat, b)
        f_out = w_self.shape[1]

    out = h[:n, :f_out]
    if f_out == 1:                                # torch's x.squeeze(-1)
        out = jnp.squeeze(out, -1)
    return out
    # TODO(synk): input_dropout / dropout / batch_norm / activation are identity
    # under the benchmark defaults (p=0, batch_norm=False, activation=None).


# --------------------------------------------------------------------------
# Pure-JAX reference
# --------------------------------------------------------------------------
def _reference_forward(a, x, params):
    hp = jax.lax.Precision.HIGHEST
    for (w_self, w_neigh, bias) in params:
        deg = jnp.maximum(jnp.sum(a, axis=-1, keepdims=True), 1.0)
        neigh = jnp.dot(a, x, precision=hp) / deg
        x = (jnp.dot(x, w_self, precision=hp)
             + jnp.dot(neigh, w_neigh, precision=hp)
             + bias.reshape(1, -1))
    if x.shape[-1] == 1:
        x = jnp.squeeze(x, -1)
    return x


if __name__ == "__main__":
    # Small deterministic synthetic graph + features
    N = 300
    IN_FEATS = 32
    HIDDEN_FEATS = 48
    OUT_FEATS = 16
    NUM_LAYERS = 3
    assert max(IN_FEATS, HIDDEN_FEATS, OUT_FEATS) <= F_PAD

    key = jax.random.PRNGKey(0)
    k_adj, k_feat, k_param = jax.random.split(key, 3)

    # dense random adjacency (~10% edge density), self-loops removed
    adj = (jax.random.uniform(k_adj, (N, N)) < 0.1).astype(jnp.float32)
    adj = adj * (1.0 - jnp.eye(N, dtype=jnp.float32))

    x = jax.random.normal(k_feat, (N, IN_FEATS), jnp.float32)

    params = tuple(init_graphsage_params(k_param, IN_FEATS, HIDDEN_FEATS,
                                         OUT_FEATS, NUM_LAYERS))

    out = graphsage_forward(adj, x, params)
    out = jax.block_until_ready(out)

    ref = _reference_forward(adj, x, params)
    assert out.shape == (N, OUT_FEATS), out.shape
    assert jnp.allclose(out, ref, atol=1e-3, rtol=1e-3), (
        "mismatch vs reference: max abs err = %s"
        % float(jnp.max(jnp.abs(out - ref))))

    print("KERNEL_OK")
</pallas_src>

<mosaic_0001>
module attributes {stable_mosaic.version = 11 : i64} {
  func.func @_sage_layer_kernel(%arg0: i32, %arg1: i32, %arg2: memref<128x256xbf16, #tpu.memory_space<vmem>>, %arg3: memref<256x128xf32, #tpu.memory_space<vmem>>, %arg4: memref<128x128xf32, #tpu.memory_space<vmem>>, %arg5: memref<128x1xf32, #tpu.memory_space<vmem>>, %arg6: memref<256x128xf32, #tpu.memory_space<vmem>>, %arg7: memref<1x128xf32, #tpu.memory_space<vmem>>, %arg8: memref<128x128xf32, #tpu.memory_space<vmem>>, %arg9: memref<128x128xf32, #tpu.memory_space<vmem>>, %arg10: memref<128x256xf32, #tpu.memory_space<vmem>>) attributes {dimension_semantics = [#tpu.dimension_semantics<parallel>, #tpu.dimension_semantics<arbitrary>], iteration_bounds = array<i64: 4, 2>, scalar_prefetch = 0 : i64, scratch_operands = 2 : i64, tpu.core_type = #tpu.core_type<tc>, window_params = [{transform_indices = @transform_0, window_bounds = array<i64: 128, 256>}, {transform_indices = @transform_1, window_bounds = array<i64: 256, 128>}, {transform_indices = @transform_2, window_bounds = array<i64: 128, 128>}, {transform_indices = @transform_3, window_bounds = array<i64: 128, 1>}, {pipeline_mode = #tpu.pipeline_mode<synchronous>, transform_indices = @transform_4, window_bounds = array<i64: 256, 128>}, {pipeline_mode = #tpu.pipeline_mode<synchronous>, transform_indices = @transform_5, window_bounds = array<i64: 1, 128>}, {transform_indices = @transform_6, window_bounds = array<i64: 128, 128>}]} {
    %c0_i32 = arith.constant 0 : i32
    %0 = arith.cmpi eq, %arg1, %c0_i32 : i32
    %1 = arith.extui %0 : i1 to i32
    %c0_i32_0 = arith.constant 0 : i32
    %2 = arith.cmpi ne, %1, %c0_i32_0 : i32
    scf.if %2 {
      %cst_9 = arith.constant 0.000000e+00 : f32
      %13 = vector.broadcast %cst_9 : f32 to vector<128x128xf32>
      %c0_10 = arith.constant 0 : index
      %c0_11 = arith.constant 0 : index
      %14 = vector.load %arg9[%c0_10, %c0_11] : memref<128x128xf32, #tpu.memory_space<vmem>>, vector<128x128xf32>
      tpu.vector_store %arg9[%c0_10, %c0_11], %13 {strides = array<i32>} : memref<128x128xf32, #tpu.memory_space<vmem>>, vector<128x128xf32>,
    } else {
    }
    %c0 = arith.constant 0 : index
    %c0_1 = arith.constant 0 : index
    %3 = vector.load %arg9[%c0, %c0_1] : memref<128x128xf32, #tpu.memory_space<vmem>>, vector<128x128xf32>
    %c0_2 = arith.constant 0 : index
    %c0_3 = arith.constant 0 : index
    %4 = vector.load %arg2[%c0_2, %c0_3] : memref<128x256xbf16, #tpu.memory_space<vmem>>, vector<128x256xbf16>
    %5 = arith.extf %4 : vector<128x256xbf16> to vector<128x256xf32>
    %c0_4 = arith.constant 0 : index
    %c0_5 = arith.constant 0 : index
    %6 = vector.load %arg3[%c0_4, %c0_5] : memref<256x128xf32, #tpu.memory_space<vmem>>, vector<256x128xf32>
    %cst = arith.constant dense<0.000000e+00> : vector<128x128xf32>
    %7 = tpu.matmul %5, %6, %cst {dimension_numbers = #tpu.dot_dimension_numbers<[1], [0], [0], [1], [0, 0, 1, 1], [], []>} : vector<128x256xf32>, vector<256x128xf32>, vector<128x128xf32> -> vector<128x128xf32>
    %8 = arith.addf %3, %7 : vector<128x128xf32>
    %c0_6 = arith.constant 0 : index
    %c0_7 = arith.constant 0 : index
    %9 = vector.load %arg9[%c0_6, %c0_7] : memref<128x128xf32, #tpu.memory_space<vmem>>, vector<128x128xf32>
    tpu.vector_store %arg9[%c0_6, %c0_7], %8 {strides = array<i32>} : memref<128x128xf32, #tpu.memory_space<vmem>>, vector<128x128xf32>,
    %c1_i32 = arith.constant 1 : i32
    %10 = arith.cmpi eq, %arg1, %c1_i32 : i32
    %11 = arith.extui %10 : i1 to i32
    %c0_i32_8 = arith.constant 0 : i32
    %12 = arith.cmpi ne, %11, %c0_i32_8 : i32
    scf.if %12 {
      %c0_9 = arith.constant 0 : index
      %c0_10 = arith.constant 0 : index
      %13 = vector.load %arg9[%c0_9, %c0_10] : memref<128x128xf32, #tpu.memory_space<vmem>>, vector<128x128xf32>
      %c0_11 = arith.constant 0 : index
      %c0_12 = arith.constant 0 : index
      %14 = vector.load %arg5[%c0_11, %c0_12] : memref<128x1xf32, #tpu.memory_space<vmem>>, vector<128x1xf32>
      %15 = vector.broadcast %14 : vector<128x1xf32> to vector<128x128xf32>
      %16 = arith.mulf %13, %15 : vector<128x128xf32>
      %c0_13 = arith.constant 0 : index
      %c0_14 = arith.constant 0 : index
      %17 = vector.load %arg4[%c0_13, %c0_14] : memref<128x128xf32, #tpu.memory_space<vmem>>, vector<128x128xf32>
      %c0_15 = arith.constant 0 : index
      %c0_16 = arith.constant 0 : index
      %18 = vector.load %arg10[%c0_15, %c0_16] : memref<128x256xf32, #tpu.memory_space<vmem>>, vector<128x128xf32>
      tpu.vector_store %arg10[%c0_15, %c0_16], %17 {strides = array<i32>} : memref<128x256xf32, #tpu.memory_space<vmem>>, vector<128x128xf32>,
      %c0_17 = arith.constant 0 : index
      %c128 = arith.constant 128 : index
      %19 = vector.load %arg10[%c0_17, %c128] : memref<128x256xf32, #tpu.memory_space<vmem>>, vector<128x128xf32>
      tpu.vector_store %arg10[%c0_17, %c128], %16 {strides = array<i32>} : memref<128x256xf32, #tpu.memory_space<vmem>>, vector<128x128xf32>,
      %c0_18 = arith.constant 0 : index
      %c0_19 = arith.constant 0 : index
      %20 = vector.load %arg10[%c0_18, %c0_19] : memref<128x256xf32, #tpu.memory_space<vmem>>, vector<128x256xf32>
      %c0_20 = arith.constant 0 : index
      %c0_21 = arith.constant 0 : index
      %21 = vector.load %arg6[%c0_20, %c0_21] : memref<256x128xf32, #tpu.memory_space<vmem>>, vector<256x128xf32>
      %cst_22 = arith.constant dense<0.000000e+00> : vector<128x128xf32>
      %22 = tpu.matmul %20, %21, %cst_22 {dimension_numbers = #tpu.dot_dimension_numbers<[1], [0], [0], [1], [0, 0, 1, 1], [], []>} : vector<128x256xf32>, vector<256x128xf32>, vector<128x128xf32> -> vector<128x128xf32>
      %c0_23 = arith.constant 0 : index
      %c0_24 = arith.constant 0 : index
      %23 = vector.load %arg7[%c0_23, %c0_24] : memref<1x128xf32, #tpu.memory_space<vmem>>, vector<1x128xf32>
      %24 = vector.broadcast %23 : vector<1x128xf32> to vector<128x128xf32>
      %25 = arith.addf %22, %24 : vector<128x128xf32>
      %c0_25 = arith.constant 0 : index
      %c0_26 = arith.constant 0 : index
      %26 = vector.load %arg8[%c0_25, %c0_26] : memref<128x128xf32, #tpu.memory_space<vmem>>, vector<128x128xf32>
      tpu.vector_store %arg8[%c0_25, %c0_26], %25 {strides = array<i32>} : memref<128x128xf32, #tpu.memory_space<vmem>>, vector<128x128xf32>,
    } else {
    }
    return
  }
  func.func @transform_0(%arg0: i32, %arg1: i32) -> (i32, i32) {
    %c0_i32 = arith.constant 0 : i32
    return %arg0, %arg1 : i32, i32
  }
  func.func @transform_1(%arg0: i32, %arg1: i32) -> (i32, i32) {
    %c0_i32 = arith.constant 0 : i32
    %c0_i32_0 = arith.constant 0 : i32
    return %arg1, %c0_i32 : i32, i32
  }
  func.func @transform_2(%arg0: i32, %arg1: i32) -> (i32, i32) {
    %c0_i32 = arith.constant 0 : i32
    %c0_i32_0 = arith.constant 0 : i32
    return %arg0, %c0_i32 : i32, i32
  }
  func.func @transform_3(%arg0: i32, %arg1: i32) -> (i32, i32) {
    %c0_i32 = arith.constant 0 : i32
    %c0_i32_0 = arith.constant 0 : i32
    return %arg0, %c0_i32 : i32, i32
  }
  func.func @transform_4(%arg0: i32, %arg1: i32) -> (i32, i32) {
    %c0_i32 = arith.constant 0 : i32
    %c0_i32_0 = arith.constant 0 : i32
    %c0_i32_1 = arith.constant 0 : i32
    return %c0_i32, %c0_i32_0 : i32, i32
  }
  func.func @transform_5(%arg0: i32, %arg1: i32) -> (i32, i32) {
    %c0_i32 = arith.constant 0 : i32
    %c0_i32_0 = arith.constant 0 : i32
    %c0_i32_1 = arith.constant 0 : i32
    return %c0_i32, %c0_i32_0 : i32, i32
  }
  func.func @transform_6(%arg0: i32, %arg1: i32) -> (i32, i32) {
    %c0_i32 = arith.constant 0 : i32
    %c0_i32_0 = arith.constant 0 : i32
    return %arg0, %c0_i32 : i32, i32
  }
}

</mosaic_0001>

<llo_original>
// kernel: graphsage_forward.3
$region0: #{graphsage_forward.3}
  #allocation0 [shape = 'u32[]', space=smem, size = 0x4, offset = 0x4, fixed_abs, tag = 'smem constant byte address 0x4 - core index']
  #allocation1 [shape = 'u32[144,128]{1,0:T(1,128)}', space=vmem, size = 0x12000, scoped, tag = 'internal scratch']
  #allocation2 [shape = 'f32[128,128]{1,0:T(8,128)}', space=vmem, size = 0x10000, scoped, tag = 'scratch operand']
  #allocation3 [shape = 'f32[128,256]{1,0:T(8,128)}', space=vmem, size = 0x20000, scoped, tag = 'scratch operand']
  %s0 = inlined_call_operand.vmem [shape: bf16[512,512], index: 0, kind: input, shape index: {}]
  %s1 = inlined_call_operand.vmem [shape: f32[512,128], index: 1, kind: input, shape index: {}, may-alias: {1,2}]
  %s2 = inlined_call_operand.vmem [shape: f32[512,128], index: 2, kind: input, shape index: {}, may-alias: {1,2}]
  %s3 = inlined_call_operand.vmem [shape: f32[512,1], index: 3, kind: input, shape index: {}]
  %s4 = inlined_call_operand.vmem [shape: f32[256,128], index: 4, kind: input, shape index: {}]
  %s5 = inlined_call_operand.vmem [shape: f32[1,128], index: 5, kind: input, shape index: {}]
  %s6 = inlined_call_operand.vmem [shape: f32[512,128], index: 6, kind: output, shape index: {}]
  %s7 = sld [smem:[#allocation0]]
  $region103: #{graphsage_forward.3} parent=0
    _
  %s9 = ssub.s32 1, %s7
  %s10 = scalar_select 0, %s9, %s7
  $region1: #{graphsage_forward.3} parent=0
    #allocation4 [shape = 'u8[131072]{0}', space=vmem, size = 0x20000, scoped, tag = 'input window, operand 0']
    loop: start=0, step=1, limit=10
    $region2: #{graphsage_forward.3} parent=1 // loop_pre_header
      _
    $region3: #{graphsage_forward.3} parent=1 // loop_header
      %s12 = sphi 0, %s16
      %p13 = scmp.ge.s32.totalorder %s12, 10
      %s19 = sphi 0, %s31
      %s20 = sphi 0, %s27
      %s21 = sphi 0, %s19
      %s22 = sphi 0, %s20
      %s23 = sphi 0, %s21
      %s24 = sphi 0, %s22
      %s36 = sphi 0, %s38
      %s39 = sphi 0, %s36
      %s40 = sphi 0, %s39
      %s56 = sphi 0, %s40
      %s62 = sphi 0, %s64
      %s65 = sphi 0, %s62
      %s66 = sphi 0, %s65
      %s82 = sphi 0, %s66
      %s88 = sphi 0, %s90
      %s91 = sphi 0, %s88
      %s92 = sphi 0, %s91
      %s108 = sphi 0, %s92
      %s114 = sphi 0, %s116
      %s117 = sphi 0, %s114
      %s118 = sphi 0, %s117
      %s134 = sphi 0, %s118
      %s138 = sphi 0, %s138
      %s140 = sphi 0, %s138
      %s141 = sphi 0, %s140
      %s155 = sphi 0, %s141
      %s159 = sphi 0, %s159
      %s161 = sphi 0, %s159
      %s162 = sphi 0, %s161
      %s176 = sphi 0, %s162
      %s182 = sphi 0, %s184
      %s185 = sphi 0, %s182
      %s186 = sphi 0, %s185
      %s202 = sphi 0, %s186
    $region4: #{graphsage_forward.3} parent=1 // loop_header_branch
      %15 = sbr.rel (%p13) target = $region8
    $region5: #{graphsage_forward.3} parent=1 // loop_body
      %s17 = ssub.s32 %s12, 1
      %s18 = ssub.s32 %s12, 2
      %s25 = sadd.s32 1, %s20
      %p26 = scmp.ge.s32.totalorder %s25, 2
      %s27 = scalar_select %p26, 0, %s25
      %s28 = sadd.s32 1, %s19
      %s29 = scalar_select %p26, %s28, %s19
      %p30 = scmp.ge.s32.totalorder %s29, 4
      %s31 = scalar_select %p30, 0, %s29
      %s32 = ssub.s32 %s19, %s31
      %s33 = ssub.s32 %s20, %s27
      %s34 = sor.u32 %s32, %s33
      %p35 = scmp.eq.s32.totalorder %s34, 0
      %s37 = sadd.s32 %s36, 1
      %s38 = scalar_select %p35, %s36, %s37
      %p41 = pneg %p35
      %p42 = scmp.eq.s32.totalorder %s12, 7
      %p43 = por %p41, %p42
      %p44 = scmp.ne.s32.totalorder %s36, %s39
      %p45 = scmp.eq.s32.totalorder %s12, 0
      %p46 = por %p44, %p45
      %p47 = scmp.ne.s32.totalorder %s36, %s39
      %p48 = scmp.eq.s32.totalorder %s17, 7
      %p49 = por %p47, %p48
      %p50 = scmp.ne.s32.totalorder %s39, %s40
      %p51 = scmp.eq.s32.totalorder %s17, 0
      %p52 = por %p50, %p51
      %p53 = scmp.ne.s32.totalorder %s39, %s40
      %p54 = scmp.eq.s32.totalorder %s18, 7
      %p55 = por %p53, %p54
      %p57 = scmp.ne.s32.totalorder %s40, %s56
      %p58 = scmp.eq.s32.totalorder %s18, 0
      %p59 = por %p57, %p58
      %s60 = ssub.s32 %s20, %s27
      %p61 = scmp.eq.s32.totalorder %s60, 0
      %s63 = sadd.s32 %s62, 1
      %s64 = scalar_select %p61, %s62, %s63
      %p67 = pneg %p61
      %p68 = scmp.eq.s32.totalorder %s12, 7
      %p69 = por %p67, %p68
      %p70 = scmp.ne.s32.totalorder %s62, %s65
      %p71 = scmp.eq.s32.totalorder %s12, 0
      %p72 = por %p70, %p71
      %p73 = scmp.ne.s32.totalorder %s62, %s65
      %p74 = scmp.eq.s32.totalorder %s17, 7
      %p75 = por %p73, %p74
      %p76 = scmp.ne.s32.totalorder %s65, %s66
      %p77 = scmp.eq.s32.totalorder %s17, 0
      %p78 = por %p76, %p77
      %p79 = scmp.ne.s32.totalorder %s65, %s66
      %p80 = scmp.eq.s32.totalorder %s18, 7
      %p81 = por %p79, %p80
      %p83 = scmp.ne.s32.totalorder %s66, %s82
      %p84 = scmp.eq.s32.totalorder %s18, 0
      %p85 = por %p83, %p84
      %s86 = ssub.s32 %s19, %s31
      %p87 = scmp.eq.s32.totalorder %s86, 0
      %s89 = sadd.s32 %s88, 1
      %s90 = scalar_select %p87, %s88, %s89
      %p93 = pneg %p87
      %p94 = scmp.eq.s32.totalorder %s12, 7
      %p95 = por %p93, %p94
      %p96 = scmp.ne.s32.totalorder %s88, %s91
      %p97 = scmp.eq.s32.totalorder %s12, 0
      %p98 = por %p96, %p97
      %p99 = scmp.ne.s32.totalorder %s88, %s91
      %p100 = scmp.eq.s32.totalorder %s17, 7
      %p101 = por %p99, %p100
      %p102 = scmp.ne.s32.totalorder %s91, %s92
      %p103 = scmp.eq.s32.totalorder %s17, 0
      %p104 = por %p102, %p103
      %p105 = scmp.ne.s32.totalorder %s91, %s92
      %p106 = scmp.eq.s32.totalorder %s18, 7
      %p107 = por %p105, %p106
      %p109 = scmp.ne.s32.totalorder %s92, %s108
      %p110 = scmp.eq.s32.totalorder %s18, 0
      %p111 = por %p109, %p110
      %s112 = ssub.s32 %s19, %s31
      %p113 = scmp.eq.s32.totalorder %s112, 0
      %s115 = sadd.s32 %s114, 1
      %s116 = scalar_select %p113, %s114, %s115
      %p119 = pneg %p113
      %p120 = scmp.eq.s32.totalorder %s12, 7
      %p121 = por %p119, %p120
      %p122 = scmp.ne.s32.totalorder %s114, %s117
      %p123 = scmp.eq.s32.totalorder %s12, 0
      %p124 = por %p122, %p123
      %p125 = scmp.ne.s32.totalorder %s114, %s117
      %p126 = scmp.eq.s32.totalorder %s17, 7
      %p127 = por %p125, %p126
      %p128 = scmp.ne.s32.totalorder %s117, %s118
      %p129 = scmp.eq.s32.totalorder %s17, 0
      %p130 = por %p128, %p129
      %p131 = scmp.ne.s32.totalorder %s117, %s118
      %p132 = scmp.eq.s32.totalorder %s18, 7
      %p133 = por %p131, %p132
      %p135 = scmp.ne.s32.totalorder %s118, %s134
      %p136 = scmp.eq.s32.totalorder %s18, 0
      %p137 = por %p135, %p136
      %s139 = sadd.s32 %s138, 1
      %p142 = scmp.eq.s32.totalorder %s12, 7
      %p143 = scmp.ne.s32.totalorder %s138, %s140
      %p144 = scmp.eq.s32.totalorder %s12, 0
      %p145 = por %p143, %p144
      %p146 = scmp.ne.s32.totalorder %s138, %s140
      %p147 = scmp.eq.s32.totalorder %s17, 7
      %p148 = por %p146, %p147
      %p149 = scmp.ne.s32.totalorder %s140, %s141
      %p150 = scmp.eq.s32.totalorder %s17, 0
      %p151 = por %p149, %p150
      %p152 = scmp.ne.s32.totalorder %s140, %s141
      %p153 = scmp.eq.s32.totalorder %s18, 7
      %p154 = por %p152, %p153
      %p156 = scmp.ne.s32.totalorder %s141, %s155
      %p157 = scmp.eq.s32.totalorder %s18, 0
      %p158 = por %p156, %p157
      %s160 = sadd.s32 %s159, 1
      %p163 = scmp.eq.s32.totalorder %s12, 7
      %p164 = scmp.ne.s32.totalorder %s159, %s161
      %p165 = scmp.eq.s32.totalorder %s12, 0
      %p166 = por %p164, %p165
      %p167 = scmp.ne.s32.totalorder %s159, %s161
      %p168 = scmp.eq.s32.totalorder %s17, 7
      %p169 = por %p167, %p168
      %p170 = scmp.ne.s32.totalorder %s161, %s162
      %p171 = scmp.eq.s32.totalorder %s17, 0
      %p172 = por %p170, %p171
      %p173 = scmp.ne.s32.totalorder %s161, %s162
      %p174 = scmp.eq.s32.totalorder %s18, 7
      %p175 = por %p173, %p174
      %p177 = scmp.ne.s32.totalorder %s162, %s176
      %p178 = scmp.eq.s32.totalorder %s18, 0
      %p179 = por %p177, %p178
      %s180 = ssub.s32 %s19, %s31
      %p181 = scmp.eq.s32.totalorder %s180, 0
      %s183 = sadd.s32 %s182, 1
      %s184 = scalar_select %p181, %s182, %s183
      %p187 = pneg %p181
      %p188 = scmp.eq.s32.totalorder %s12, 7
      %p189 = por %p187, %p188
      %p190 = scmp.ne.s32.totalorder %s182, %s185
      %p191 = scmp.eq.s32.totalorder %s12, 0
      %p192 = por %p190, %p191
      %p193 = scmp.ne.s32.totalorder %s182, %s185
      %p194 = scmp.eq.s32.totalorder %s17, 7
      %p195 = por %p193, %p194
      %p196 = scmp.ne.s32.totalorder %s185, %s186
      %p197 = scmp.eq.s32.totalorder %s17, 0
      %p198 = por %p196, %p197
      %p199 = scmp.ne.s32.totalorder %s185, %s186
      %p200 = scmp.eq.s32.totalorder %s18, 7
      %p201 = por %p199, %p200
      %p203 = scmp.ne.s32.totalorder %s186, %s202
      %p204 = scmp.eq.s32.totalorder %s18, 0
      %p205 = por %p203, %p204
      %p206 = scmp.le.s32.totalorder 1, %s12
      %p207 = scmp.lt.s32.totalorder %s12, 9
      %p208 = pnand %p206, %p207
      %p209 = pneg %p208
      // Predicated region
      $region9: #{graphsage_forward.3} parent=5 // pred_check
        _
      $region10: #{graphsage_forward.3} parent=5 // pred_check_branch
        %211 = sbr.rel (%p208) target = $region12
      $region11: #{graphsage_forward.3} parent=5 // pred_region
        %s212 = ssub.s32 %s12, 1
        // Predicated region
        $region13: #{graphsage_forward.3} parent=11 // pred_check
          %p213 = pneg %p151
        $region14: #{graphsage_forward.3} parent=11 // pred_check_branch
          %215 = sbr.rel (%p213) target = $region16
        $region15: #{graphsage_forward.3} parent=11 // pred_region
          _
        $region16: #{graphsage_forward.3} parent=11 // pred_fallthru
          _
        // Predicated region
        $region17: #{graphsage_forward.3} parent=11 // pred_check
          %p216 = pneg %p172
        $region18: #{graphsage_forward.3} parent=11 // pred_check_branch
          %218 = sbr.rel (%p216) target = $region20
        $region19: #{graphsage_forward.3} parent=11 // pred_region
          _
        $region20: #{graphsage_forward.3} parent=11 // pred_fallthru
          _
      $region12: #{graphsage_forward.3} parent=5 // pred_fallthru
        _
      %p219 = scmp.lt.s32.totalorder %s12, 8
      // Predicated region
      $region21: #{graphsage_forward.3} parent=5 // pred_check
        %p220 = pneg %p219
      $region22: #{graphsage_forward.3} parent=5 // pred_check_branch
        %222 = sbr.rel (%p220) target = $region24
      $region23: #{graphsage_forward.3} parent=5 // pred_region
        // Predicated region
        $region25: #{graphsage_forward.3} parent=23 // pred_check
          %p223 = pneg %p46
        $region26: #{graphsage_forward.3} parent=23 // pred_check_branch
          %225 = sbr.rel (%p223) target = $region28
        $region27: #{graphsage_forward.3} parent=23 // pred_region
          %s226 = sand.u32 %s36, 1
          %s227 = sand.u32 %s36, 1
          %s228 = smul.addr %s227, 128
          %s229 = scalar_lea.vmem [#allocation4], %s228
          %s230 = smul.u32 16, %s19
          %s231 = smul.u32 2, %s20
          %s232 = smul.addr %s230, 4
          %s233 = sadd.s32 %s231, %s232
          %s234 = smul.addr %s233, 4
          %s235 = scalar_lea.vmem %s0, %s234
          // Predicated region
          $region29: #{graphsage_forward.3} parent=27 // pred_check
            _
          $region30: #{graphsage_forward.3} parent=27 // pred_check_branch
            %237 = sbr.rel (0) target = $region32
          $region31: #{graphsage_forward.3} parent=27 // pred_region
            // Predicated region
            $region33: #{graphsage_forward.3} parent=31 // pred_check
              _
            $region34: #{graphsage_forward.3} parent=31 // pred_check_branch
              %239 = sbr.rel (0) target = $region36
            $region35: #{graphsage_forward.3} parent=31 // pred_region
              // Predicated region
              $region48: #{graphsage_forward.3} parent=35 // pred_check
                _
              $region49: #{graphsage_forward.3} parent=35 // pred_check_branch
                %284 = sbr.rel (0) target = $region51
              $region50: #{graphsage_forward.3} parent=35 // pred_region
                loop: start=0, step=1, limit=1
                $region52: #{graphsage_forward.3} parent=50 // loop_pre_header
                  _
                $region53: #{graphsage_forward.3} parent=50 // loop_header
                  %s286 = sphi 0, %s290
                  %p287 = scmp.ge.s32.totalorder %s286, 1
                  %s291 = sphi %s235, %s235
                  %s292 = sphi %s229, %s229
                $region54: #{graphsage_forward.3} parent=50 // loop_header_branch
                  %289 = sbr.rel (%p287) target = $region58
                $region55: #{graphsage_forward.3} parent=50 // loop_body
                  %v293 = vld [vmem:[%s291] sm:$0xff]
                  %294 = vst [vmem:[%s292] sm:$0xff] %v293
                  %v295 = vld [vmem:[%s291 + $0x10] sm:$0xff]
                  %296 = vst [vmem:[%s292 + $0x8] sm:$0xff] %v295
                  %v297 = vld [vmem:[%s291 + $0x20] sm:$0xff]
                  %298 = vst [vmem:[%s292 + $0x10] sm:$0xff] %v297
                  %v299 = vld [vmem:[%s291 + $0x30] sm:$0xff]
                  %300 = vst [vmem:[%s292 + $0x18] sm:$0xff] %v299
                  %v301 = vld [vmem:[%s291 + $0x40] sm:$0xff]
                  %302 = vst [vmem:[%s292 + $0x20] sm:$0xff] %v301
                  %v303 = vld [vmem:[%s291 + $0x50] sm:$0xff]
                  %304 = vst [vmem:[%s292 + $0x28] sm:$0xff] %v303
                  %v305 = vld [vmem:[%s291 + $0x60] sm:$0xff]
                  %306 = vst [vmem:[%s292 + $0x30] sm:$0xff] %v305
                  %v307 = vld [vmem:[%s291 + $0x70] sm:$0xff]
                  %308 = vst [vmem:[%s292 + $0x38] sm:$0xff] %v307
                  %v309 = vld [vmem:[%s291 + $0x80] sm:$0xff]
                  %310 = vst [vmem:[%s292 + $0x40] sm:$0xff] %v309
                  %v311 = vld [vmem:[%s291 + $0x90] sm:$0xff]
                  %312 = vst [vmem:[%s292 + $0x48] sm:$0xff] %v311
                  %v313 = vld [vmem:[%s291 + $0xa0] sm:$0xff]
                  %314 = vst [vmem:[%s292 + $0x50] sm:$0xff] %v313
                  %v315 = vld [vmem:[%s291 + $0xb0] sm:$0xff]
                  %316 = vst [vmem:[%s292 + $0x58] sm:$0xff] %v315
                  %v317 = vld [vmem:[%s291 + $0xc0] sm:$0xff]
                  %318 = vst [vmem:[%s292 + $0x60] sm:$0xff] %v317
                  %v319 = vld [vmem:[%s291 + $0xd0] sm:$0xff]
                  %320 = vst [vmem:[%s292 + $0x68] sm:$0xff] %v319
                  %v321 = vld [vmem:[%s291 + $0xe0] sm:$0xff]
                  %322 = vst [vmem:[%s292 + $0x70] sm:$0xff] %v321
                  %v323 = vld [vmem:[%s291 + $0xf0] sm:$0xff]
                  %324 = vst [vmem:[%s292 + $0x78] sm:$0xff] %v323
                $region56: #{graphsage_forward.3} parent=50 // loop_footer
                  %s290 = sadd.s32 1, %s286
                $region57: #{graphsage_forward.3} parent=50 // loop_footer_branch
                  %285 = sbr.rel target = $region53
                $region58: #{graphsage_forward.3} parent=50 // loop_exit
                  _
              $region51: #{graphsage_forward.3} parent=35 // pred_fallthru
                _
              // Predicated region
              $region59: #{graphsage_forward.3} parent=35 // pred_check
                _
              $region60: #{graphsage_forward.3} parent=35 // pred_check_branch
                %326 = sbr.rel target = $region62
              $region61: #{graphsage_forward.3} parent=35 // pred_region
                _
              $region62: #{graphsage_forward.3} parent=35 // pred_fallthru
                _
            $region36: #{graphsage_forward.3} parent=31 // pred_fallthru
              _
            // Predicated region
            $region37: #{graphsage_forward.3} parent=31 // pred_check
              _
            $region38: #{graphsage_forward.3} parent=31 // pred_check_branch
              %241 = sbr.rel target = $region40
            $region39: #{graphsage_forward.3} parent=31 // pred_region
              loop: start=0, step=1, limit=1
              $region41: #{graphsage_forward.3} parent=39 // loop_pre_header
                _
              $region42: #{graphsage_forward.3} parent=39 // loop_header
                %s244 = sphi 0, %s248
                %p245 = scmp.ge.s32.totalorder %s244, 1
                %s249 = sphi %s235, %s235
                %s250 = sphi %s229, %s229
              $region43: #{graphsage_forward.3} parent=39 // loop_header_branch
                %247 = sbr.rel (%p245) target = $region47
              $region44: #{graphsage_forward.3} parent=39 // loop_body
                %v251 = vld [vmem:[%s249] sm:$0xff]
                %252 = vst [vmem:[%s250] sm:$0xff] %v251
                %v253 = vld [vmem:[%s249 + $0x10] sm:$0xff]
                %254 = vst [vmem:[%s250 + $0x8] sm:$0xff] %v253
                %v255 = vld [vmem:[%s249 + $0x20] sm:$0xff]
                %256 = vst [vmem:[%s250 + $0x10] sm:$0xff] %v255
                %v257 = vld [vmem:[%s249 + $0x30] sm:$0xff]
                %258 = vst [vmem:[%s250 + $0x18] sm:$0xff] %v257
                %v259 = vld [vmem:[%s249 + $0x40] sm:$0xff]
                %260 = vst [vmem:[%s250 + $0x20] sm:$0xff] %v259
                %v261 = vld [vmem:[%s249 + $0x50] sm:$0xff]
                %262 = vst [vmem:[%s250 + $0x28] sm:$0xff] %v261
                %v263 = vld [vmem:[%s249 + $0x60] sm:$0xff]
                %264 = vst [vmem:[%s250 + $0x30] sm:$0xff] %v263
                %v265 = vld [vmem:[%s249 + $0x70] sm:$0xff]
                %266 = vst [vmem:[%s250 + $0x38] sm:$0xff] %v265
                %v267 = vld [vmem:[%s249 + $0x80] sm:$0xff]
                %268 = vst [vmem:[%s250 + $0x40] sm:$0xff] %v267
                %v269 = vld [vmem:[%s249 + $0x90] sm:$0xff]
                %270 = vst [vmem:[%s250 + $0x48] sm:$0xff] %v269
                %v271 = vld [vmem:[%s249 + $0xa0] sm:$0xff]
                %272 = vst [vmem:[%s250 + $0x50] sm:$0xff] %v271
                %v273 = vld [vmem:[%s249 + $0xb0] sm:$0xff]
                %274 = vst [vmem:[%s250 + $0x58] sm:$0xff] %v273
                %v275 = vld [vmem:[%s249 + $0xc0] sm:$0xff]
                %276 = vst [vmem:[%s250 + $0x60] sm:$0xff] %v275
                %v277 = vld [vmem:[%s249 + $0xd0] sm:$0xff]
                %278 = vst [vmem:[%s250 + $0x68] sm:$0xff] %v277
                %v279 = vld [vmem:[%s249 + $0xe0] sm:$0xff]
                %280 = vst [vmem:[%s250 + $0x70] sm:$0xff] %v279
                %v281 = vld [vmem:[%s249 + $0xf0] sm:$0xff]
                %282 = vst [vmem:[%s250 + $0x78] sm:$0xff] %v281
              $region45: #{graphsage_forward.3} parent=39 // loop_footer
                %s248 = sadd.s32 1, %s244
              $region46: #{graphsage_forward.3} parent=39 // loop_footer_branch
                %243 = sbr.rel target = $region42
              $region47: #{graphsage_forward.3} parent=39 // loop_exit
                _
            $region40: #{graphsage_forward.3} parent=31 // pred_fallthru
              _
          $region32: #{graphsage_forward.3} parent=27 // pred_fallthru
            _
          %327 = vnop
        $region28: #{graphsage_forward.3} parent=23 // pred_fallthru
          _
        // Predicated region
        $region63: #{graphsage_forward.3} parent=23 // pred_check
          %p328 = pneg %p72
        $region64: #{graphsage_forward.3} parent=23 // pred_check_branch
          %330 = sbr.rel (%p328) target = $region66
        $region65: #{graphsage_forward.3} parent=23 // pred_region
          %s331 = smul.u32 32, %s20
          %p332 = scmp.lt.s32.totalorder %s331, 63
          %s333 = scalar_select %p332, %s331, 63
          %s334 = smul.addr %s333, 8
          %s335 = scalar_lea.vmem %s1, %s334
          %s336 = smul.u32 32, %s20
        $region66: #{graphsage_forward.3} parent=23 // pred_fallthru
          _
        // Predicated region
        $region67: #{graphsage_forward.3} parent=23 // pred_check
          %p337 = pneg %p98
        $region68: #{graphsage_forward.3} parent=23 // pred_check_branch
          %339 = sbr.rel (%p337) target = $region70
        $region69: #{graphsage_forward.3} parent=23 // pred_region
          %s340 = smul.u32 16, %s19
          %p341 = scmp.lt.s32.totalorder %s340, 63
          %s342 = scalar_select %p341, %s340, 63
          %s343 = smul.addr %s342, 8
          %s344 = scalar_lea.vmem %s2, %s343
          %s345 = smul.u32 16, %s19
        $region70: #{graphsage_forward.3} parent=23 // pred_fallthru
          _
        // Predicated region
        $region71: #{graphsage_forward.3} parent=23 // pred_check
          %p346 = pneg %p124
        $region72: #{graphsage_forward.3} parent=23 // pred_check_branch
          %348 = sbr.rel (%p346) target = $region74
        $region73: #{graphsage_forward.3} parent=23 // pred_region
          %s349 = smul.u32 16, %s19
          %p350 = scmp.lt.s32.totalorder %s349, 63
          %s351 = scalar_select %p350, %s349, 63
          %s352 = smul.addr %s351, 8
          %s353 = scalar_lea.vmem %s3, %s352
          %s354 = smul.u32 16, %s19
        $region74: #{graphsage_forward.3} parent=23 // pred_fallthru
          _
      $region24: #{graphsage_forward.3} parent=5 // pred_fallthru
        _
      %p355 = scmp.le.s32.totalorder 1, %s12
      %p356 = scmp.lt.s32.totalorder %s12, 9
      %p357 = pnand %p355, %p356
      %p358 = pneg %p357
      // Predicated region
      $region75: #{graphsage_forward.3} parent=5 // pred_check
        _
      $region76: #{graphsage_forward.3} parent=5 // pred_check_branch
        %360 = sbr.rel (%p357) target = $region78
      $region77: #{graphsage_forward.3} parent=5 // pred_region
        %s361 = ssub.s32 %s12, 1
        %s362 = sand.u32 %s39, 1
        %s363 = sand.u32 %s39, 1
        %s364 = smul.addr %s363, 128
        %s365 = scalar_lea.vmem [#allocation4], %s364
        // Predicated region
        $region79: #{graphsage_forward.3} parent=77 // pred_check
          %p366 = pneg %p52
        $region80: #{graphsage_forward.3} parent=77 // pred_check_branch
          %368 = sbr.rel (%p366) target = $region82
        $region81: #{graphsage_forward.3} parent=77 // pred_region
          _
        $region82: #{graphsage_forward.3} parent=77 // pred_fallthru
          _
        %s369 = sand.u32 %s39, 1
        %s370 = sand.u32 %s39, 1
        %s371 = smul.addr %s370, 128
        %s372 = scalar_lea.vmem [#allocation4], %s371
        %p373 = pneg %p52
        %p374 = pneg %p49
        %s375 = smul.u32 32, %s22
        %p376 = scmp.lt.s32.totalorder %s375, 63
        %s377 = scalar_select %p376, %s375, 63
        %s378 = smul.addr %s377, 8
        %s379 = scalar_lea.vmem %s1, %s378
        %p380 = pneg %p78
        %p381 = pneg %p75
        %s382 = smul.u32 16, %s21
        %p383 = scmp.lt.s32.totalorder %s382, 63
        %s384 = scalar_select %p383, %s382, 63
        %s385 = smul.addr %s384, 8
        %s386 = scalar_lea.vmem %s2, %s385
        %p387 = pneg %p104
        %p388 = pneg %p101
        %s389 = smul.u32 16, %s21
        %p390 = scmp.lt.s32.totalorder %s389, 63
        %s391 = scalar_select %p390, %s389, 63
        %s392 = smul.addr %s391, 8
        %s393 = scalar_lea.vmem %s3, %s392
        %p394 = pneg %p130
        %p395 = pneg %p127
        %p396 = pneg %p151
        %p397 = pneg %p148
        %p398 = pneg %p172
        %p399 = pneg %p169
        %p400 = pneg %p198
        %p401 = pneg %p195
        %s402 = smul.u32 16, %s21
        %p403 = scmp.lt.s32.totalorder %s402, 63
        %s404 = scalar_select %p403, %s402, 63
        %s405 = smul.addr %s404, 8
        %s406 = scalar_lea.vmem %s6, %s405
        %s407 = smul.u32 16, %s21
        %s408 = smul.u32 2, %s22
        %s409 = smul.u32 32, %s22
        %p410 = scmp.lt.s32.totalorder %s409, 63
        %s411 = scalar_select %p410, %s409, 63
        %s412 = smul.addr %s411, 8
        %s413 = scalar_lea.vmem %s1, %s412
        %s414 = smul.u32 32, %s22
        %s415 = smul.u32 16, %s21
        %p416 = scmp.lt.s32.totalorder %s415, 63
        %s417 = scalar_select %p416, %s415, 63
        %s418 = smul.addr %s417, 8
        %s419 = scalar_lea.vmem %s2, %s418
        %s420 = smul.u32 16, %s21
        %s421 = smul.u32 16, %s21
        %p422 = scmp.lt.s32.totalorder %s421, 63
        %s423 = scalar_select %p422, %s421, 63
        %s424 = smul.addr %s423, 8
        %s425 = scalar_lea.vmem %s3, %s424
        %s426 = smul.u32 16, %s21
        %s427 = smul.u32 16, %s21
        %p428 = scmp.lt.s32.totalorder %s427, 63
        %s429 = scalar_select %p428, %s427, 63
        %s430 = smul.addr %s429, 8
        %s431 = scalar_lea.vmem %s6, %s430
        %s432 = smul.u32 16, %s21
        %p433 = scmp.eq.s32.totalorder %s22, 0
        // Predicated region
        $region83: #{graphsage_forward.3} parent=77 // pred_check
          %p434 = pneg %p433
        $region84: #{graphsage_forward.3} parent=77 // pred_check_branch
          %436 = sbr.rel (%p434) target = $region86
        $region85: #{graphsage_forward.3} parent=77 // pred_region
          %437 = vst [vmem:[#allocation2] sm:$0xff] 0.0
          %438 = vst [vmem:[#allocation2 + $0x8] sm:$0xff] 0.0
          %439 = vst [vmem:[#allocation2 + $0x10] sm:$0xff] 0.0
          %440 = vst [vmem:[#allocation2 + $0x18] sm:$0xff] 0.0
          %441 = vst [vmem:[#allocation2 + $0x20] sm:$0xff] 0.0
          %442 = vst [vmem:[#allocation2 + $0x28] sm:$0xff] 0.0
          %443 = vst [vmem:[#allocation2 + $0x30] sm:$0xff] 0.0
          %444 = vst [vmem:[#allocation2 + $0x38] sm:$0xff] 0.0
          %445 = vst [vmem:[#allocation2 + $0x40] sm:$0xff] 0.0
          %446 = vst [vmem:[#allocation2 + $0x48] sm:$0xff] 0.0
          %447 = vst [vmem:[#allocation2 + $0x50] sm:$0xff] 0.0
          %448 = vst [vmem:[#allocation2 + $0x58] sm:$0xff] 0.0
          %449 = vst [vmem:[#allocation2 + $0x60] sm:$0xff] 0.0
          %450 = vst [vmem:[#allocation2 + $0x68] sm:$0xff] 0.0
          %451 = vst [vmem:[#allocation2 + $0x70] sm:$0xff] 0.0
          %452 = vst [vmem:[#allocation2 + $0x78] sm:$0xff] 0.0
        $region86: #{graphsage_forward.3} parent=77 // pred_fallthru
          _
        %v453 = vld [vmem:[#allocation2] sm:$0xff]
        %v454 = vld [vmem:[#allocation2 + $0x8] sm:$0xff]
        %v455 = vld [vmem:[#allocation2 + $0x10] sm:$0xff]
        %v456 = vld [vmem:[#allocation2 + $0x18] sm:$0xff]
        %v457 = vld [vmem:[#allocation2 + $0x20] sm:$0xff]
        %v458 = vld [vmem:[#allocation2 + $0x28] sm:$0xff]
        %v459 = vld [vmem:[#allocation2 + $0x30] sm:$0xff]
        %v460 = vld [vmem:[#allocation2 + $0x38] sm:$0xff]
        %v461 = vld [vmem:[#allocation2 + $0x40] sm:$0xff]
        %v462 = vld [vmem:[#allocation2 + $0x48] sm:$0xff]
        %v463 = vld [vmem:[#allocation2 + $0x50] sm:$0xff]
        %v464 = vld [vmem:[#allocation2 + $0x58] sm:$0xff]
        %v465 = vld [vmem:[#allocation2 + $0x60] sm:$0xff]
        %v466 = vld [vmem:[#allocation2 + $0x68] sm:$0xff]
        %v467 = vld [vmem:[#allocation2 + $0x70] sm:$0xff]
        %v468 = vld [vmem:[#allocation2 + $0x78] sm:$0xff]
        %v469 = vld [vmem:[%s365] sm:$0xff]
        %v470 = vld [vmem:[%s365 + $0x8] sm:$0xff]
        %v471 = vld [vmem:[%s365 + $0x10] sm:$0xff]
        %v472 = vld [vmem:[%s365 + $0x18] sm:$0xff]
        %v473 = vld [vmem:[%s365 + $0x20] sm:$0xff]
        %v474 = vld [vmem:[%s365 + $0x28] sm:$0xff]
        %v475 = vld [vmem:[%s365 + $0x30] sm:$0xff]
        %v476 = vld [vmem:[%s365 + $0x38] sm:$0xff]
        %v477 = vld [vmem:[%s365 + $0x40] sm:$0xff]
        %v478 = vld [vmem:[%s365 + $0x48] sm:$0xff]
        %v479 = vld [vmem:[%s365 + $0x50] sm:$0xff]
        %v480 = vld [vmem:[%s365 + $0x58] sm:$0xff]
        %v481 = vld [vmem:[%s365 + $0x60] sm:$0xff]
        %v482 = vld [vmem:[%s365 + $0x68] sm:$0xff]
        %v483 = vld [vmem:[%s365 + $0x70] sm:$0xff]
        %v484 = vld [vmem:[%s365 + $0x78] sm:$0xff]
        %v485 = vunpack.c.l.bf16 %v469
        %v486 = vunpack.c.h.bf16 %v469
        %v487 = vunpack.c.l.bf16 %v470
        %v488 = vunpack.c.h.bf16 %v470
        %v489 = vunpack.c.l.bf16 %v471
        %v490 = vunpack.c.h.bf16 %v471
        %v491 = vunpack.c.l.bf16 %v472
        %v492 = vunpack.c.h.bf16 %v472
        %v493 = vunpack.c.l.bf16 %v473
        %v494 = vunpack.c.h.bf16 %v473
        %v495 = vunpack.c.l.bf16 %v474
        %v496 = vunpack.c.h.bf16 %v474
        %v497 = vunpack.c.l.bf16 %v475
        %v498 = vunpack.c.h.bf16 %v475
        %v499 = vunpack.c.l.bf16 %v476
        %v500 = vunpack.c.h.bf16 %v476
        %v501 = vunpack.c.l.bf16 %v477
        %v502 = vunpack.c.h.bf16 %v477
        %v503 = vunpack.c.l.bf16 %v478
        %v504 = vunpack.c.h.bf16 %v478
        %v505 = vunpack.c.l.bf16 %v479
        %v506 = vunpack.c.h.bf16 %v479
        %v507 = vunpack.c.l.bf16 %v480
        %v508 = vunpack.c.h.bf16 %v480
        %v509 = vunpack.c.l.bf16 %v481
        %v510 = vunpack.c.h.bf16 %v481
        %v511 = vunpack.c.l.bf16 %v482
        %v512 = vunpack.c.h.bf16 %v482
        %v513 = vunpack.c.l.bf16 %v483
        %v514 = vunpack.c.h.bf16 %v483
        %v515 = vunpack.c.l.bf16 %v484
        %v516 = vunpack.c.h.bf16 %v484
        %v517 = vld [vmem:[%s413] sm:$0xff]
        %v518 = vld [vmem:[%s413 + $0x8] sm:$0xff]
        %v519 = vld [vmem:[%s413 + $0x10] sm:$0xff]
        %v520 = vld [vmem:[%s413 + $0x18] sm:$0xff]
        %v521 = vld [vmem:[%s413 + $0x20] sm:$0xff]
        %v522 = vld [vmem:[%s413 + $0x28] sm:$0xff]
        %v523 = vld [vmem:[%s413 + $0x30] sm:$0xff]
        %v524 = vld [vmem:[%s413 + $0x38] sm:$0xff]
        %v525 = vld [vmem:[%s413 + $0x40] sm:$0xff]
        %v526 = vld [vmem:[%s413 + $0x48] sm:$0xff]
        %v527 = vld [vmem:[%s413 + $0x50] sm:$0xff]
        %v528 = vld [vmem:[%s413 + $0x58] sm:$0xff]
        %v529 = vld [vmem:[%s413 + $0x60] sm:$0xff]
        %v530 = vld [vmem:[%s413 + $0x68] sm:$0xff]
        %v531 = vld [vmem:[%s413 + $0x70] sm:$0xff]
        %v532 = vld [vmem:[%s413 + $0x78] sm:$0xff]
        %v533 = vld [vmem:[%s413 + $0x80] sm:$0xff]
        %v534 = vld [vmem:[%s413 + $0x88] sm:$0xff]
        %v535 = vld [vmem:[%s413 + $0x90] sm:$0xff]
        %v536 = vld [vmem:[%s413 + $0x98] sm:$0xff]
        %v537 = vld [vmem:[%s413 + $0xa0] sm:$0xff]
        %v538 = vld [vmem:[%s413 + $0xa8] sm:$0xff]
        %v539 = vld [vmem:[%s413 + $0xb0] sm:$0xff]
        %v540 = vld [vmem:[%s413 + $0xb8] sm:$0xff]
        %v541 = vld [vmem:[%s413 + $0xc0] sm:$0xff]
        %v542 = vld [vmem:[%s413 + $0xc8] sm:$0xff]
        %v543 = vld [vmem:[%s413 + $0xd0] sm:$0xff]
        %v544 = vld [vmem:[%s413 + $0xd8] sm:$0xff]
        %v545 = vld [vmem:[%s413 + $0xe0] sm:$0xff]
        %v546 = vld [vmem:[%s413 + $0xe8] sm:$0xff]
        %v547 = vld [vmem:[%s413 + $0xf0] sm:$0xff]
        %v548 = vld [vmem:[%s413 + $0xf8] sm:$0xff]
        %549 = vmatprep.subr.mxu0 0.0
        %550 = vmatpush1.msra.mxu0 %v517
        %551 = vmatprep.subr.mxu0 0.0
        %552 = vmatpush1.msra.mxu0 %v518
        %553 = vmatprep.subr.mxu0 0.0
        %554 = vmatpush1.msra.mxu0 %v519
        %555 = vmatprep.subr.mxu0 0.0
        %556 = vmatpush1.msra.mxu0 %v520
        %557 = vmatprep.subr.mxu0 0.0
        %558 = vmatpush1.msra.mxu0 %v521
        %559 = vmatprep.subr.mxu0 0.0
        %560 = vmatpush1.msra.mxu0 %v522
        %561 = vmatprep.subr.mxu0 0.0
        %562 = vmatpush1.msra.mxu0 %v523
        %563 = vmatprep.subr.mxu0 0.0
        %564 = vmatpush1.msra.mxu0 %v524
        %565 = vmatprep.subr.mxu0 0.0
        %566 = vmatpush1.msra.mxu0 %v525
        %567 = vmatprep.subr.mxu0 0.0
        %568 = vmatpush1.msra.mxu0 %v526
        %569 = vmatprep.subr.mxu0 0.0
        %570 = vmatpush1.msra.mxu0 %v527
        %571 = vmatprep.subr.mxu0 0.0
        %572 = vmatpush1.msra.mxu0 %v528
        %573 = vmatprep.subr.mxu0 0.0
        %574 = vmatpush1.msra.mxu0 %v529
        %575 = vmatprep.subr.mxu0 0.0
        %576 = vmatpush1.msra.mxu0 %v530
        %577 = vmatprep.subr.mxu0 0.0
        %578 = vmatpush1.msra.mxu0 %v531
        %579 = vmatprep.subr.mxu0 0.0
        %580 = vmatpush1.msra.mxu0 %v532
        %581 = vmatprep.subr.mxu0 0.0
        %582 = vmatpush1.msra.mxu0 %v533
        %583 = vmatprep.subr.mxu0 0.0
        %584 = vmatpush1.msra.mxu0 %v534
        %585 = vmatprep.subr.mxu0 0.0
        %586 = vmatpush1.msra.mxu0 %v535
        %587 = vmatprep.subr.mxu0 0.0
        %588 = vmatpush1.msra.mxu0 %v536
        %589 = vmatprep.subr.mxu0 0.0
        %590 = vmatpush1.msra.mxu0 %v537
        %591 = vmatprep.subr.mxu0 0.0
        %592 = vmatpush1.msra.mxu0 %v538
        %593 = vmatprep.subr.mxu0 0.0
        %594 = vmatpush1.msra.mxu0 %v539
        %595 = vmatprep.subr.mxu0 0.0
        %596 = vmatpush1.msra.mxu0 %v540
        %597 = vmatprep.subr.mxu0 0.0
        %598 = vmatpush1.msra.mxu0 %v541
        %599 = vmatprep.subr.mxu0 0.0
        %600 = vmatpush1.msra.mxu0 %v542
        %601 = vmatprep.subr.mxu0 0.0
        %602 = vmatpush1.msra.mxu0 %v543
        %603 = vmatprep.subr.mxu0 0.0
        %604 = vmatpush1.msra.mxu0 %v544
        %605 = vmatprep.subr.mxu0 0.0
        %606 = vmatpush1.msra.mxu0 %v545
        %607 = vmatprep.subr.mxu0 0.0
        %608 = vmatpush1.msra.mxu0 %v546
        %609 = vmatprep.subr.mxu0 0.0
        %610 = vmatpush1.msra.mxu0 %v547
        %611 = vmatprep.subr.mxu0 0.0
        %612 = vmatpush1.msra.mxu0 %v548
        %613 = vmatprep.mubr.f32.mxu0 %v486
        %614 = vmatmul.mubr.f32.gmra.mrb[0].mxu0 %v485
        %v615 = vpop.f32.mrb[0].mxu0
        %v616 = vadd.f32 0.0, %v615
        %v617 = vpop.f32.mrb[0].mxu0
        %618 = vmatprep.mubr.f32.mxu0 %v488
        %619 = vmatmul.mubr.f32.gmra.mrb[0].mxu0 %v487
        %v620 = vpop.f32.mrb[0].mxu0
        %v621 = vadd.f32 0.0, %v620
        %v622 = vpop.f32.mrb[0].mxu0
        %623 = vmatprep.mubr.f32.mxu0 %v490
        %624 = vmatmul.mubr.f32.gmra.mrb[0].mxu0 %v489
        %v625 = vpop.f32.mrb[0].mxu0
        %v626 = vadd.f32 0.0, %v625
        %v627 = vpop.f32.mrb[0].mxu0
        %628 = vmatprep.mubr.f32.mxu0 %v492
        %629 = vmatmul.mubr.f32.gmra.mrb[0].mxu0 %v491
        %v630 = vpop.f32.mrb[0].mxu0
        %v631 = vadd.f32 0.0, %v630
        %v632 = vpop.f32.mrb[0].mxu0
        %633 = vmatprep.mubr.f32.mxu0 %v494
        %634 = vmatmul.mubr.f32.gmra.mrb[0].mxu0 %v493
        %v635 = vpop.f32.mrb[0].mxu0
        %v636 = vadd.f32 0.0, %v635
        %v637 = vpop.f32.mrb[0].mxu0
        %638 = vmatprep.mubr.f32.mxu0 %v496
        %639 = vmatmul.mubr.f32.gmra.mrb[0].mxu0 %v495
        %v640 = vpop.f32.mrb[0].mxu0
        %v641 = vadd.f32 0.0, %v640
        %v642 = vpop.f32.mrb[0].mxu0
        %643 = vmatprep.mubr.f32.mxu0 %v498
        %644 = vmatmul.mubr.f32.gmra.mrb[0].mxu0 %v497
        %v645 = vpop.f32.mrb[0].mxu0
        %v646 = vadd.f32 0.0, %v645
        %v647 = vpop.f32.mrb[0].mxu0
        %648 = vmatprep.mubr.f32.mxu0 %v500
        %649 = vmatmul.mubr.f32.gmra.mrb[0].mxu0 %v499
        %v650 = vpop.f32.mrb[0].mxu0
        %v651 = vadd.f32 0.0, %v650
        %v652 = vpop.f32.mrb[0].mxu0
        %653 = vmatprep.mubr.f32.mxu0 %v502
        %654 = vmatmul.mubr.f32.gmra.mrb[0].mxu0 %v501
        %v655 = vpop.f32.mrb[0].mxu0
        %v656 = vadd.f32 0.0, %v655
        %v657 = vpop.f32.mrb[0].mxu0
        %658 = vmatprep.mubr.f32.mxu0 %v504
        %659 = vmatmul.mubr.f32.gmra.mrb[0].mxu0 %v503
        %v660 = vpop.f32.mrb[0].mxu0
        %v661 = vadd.f32 0.0, %v660
        %v662 = vpop.f32.mrb[0].mxu0
        %663 = vmatprep.mubr.f32.mxu0 %v506
        %664 = vmatmul.mubr.f32.gmra.mrb[0].mxu0 %v505
        %v665 = vpop.f32.mrb[0].mxu0
        %v666 = vadd.f32 0.0, %v665
        %v667 = vpop.f32.mrb[0].mxu0
        %668 = vmatprep.mubr.f32.mxu0 %v508
        %669 = vmatmul.mubr.f32.gmra.mrb[0].mxu0 %v507
        %v670 = vpop.f32.mrb[0].mxu0
        %v671 = vadd.f32 0.0, %v670
        %v672 = vpop.f32.mrb[0].mxu0
        %673 = vmatprep.mubr.f32.mxu0 %v510
        %674 = vmatmul.mubr.f32.gmra.mrb[0].mxu0 %v509
        %v675 = vpop.f32.mrb[0].mxu0
        %v676 = vadd.f32 0.0, %v675
        %v677 = vpop.f32.mrb[0].mxu0
        %678 = vmatprep.mubr.f32.mxu0 %v512
        %679 = vmatmul.mubr.f32.gmra.mrb[0].mxu0 %v511
        %v680 = vpop.f32.mrb[0].mxu0
        %v681 = vadd.f32 0.0, %v680
        %v682 = vpop.f32.mrb[0].mxu0
        %683 = vmatprep.mubr.f32.mxu0 %v514
        %684 = vmatmul.mubr.f32.gmra.mrb[0].mxu0 %v513
        %v685 = vpop.f32.mrb[0].mxu0
        %v686 = vadd.f32 0.0, %v685
        %v687 = vpop.f32.mrb[0].mxu0
        %688 = vmatprep.mubr.f32.mxu0 %v516
        %689 = vmatmul.mubr.f32.gmra.mrb[0].mxu0 %v515
        %v690 = vpop.f32.mrb[0].mxu0
        %v691 = vadd.f32 0.0, %v690
        %v692 = vpop.f32.mrb[0].mxu0
        %693 = vdwg.mxu0
        %v694 = vadd.f32 %v453, %v616
        %v695 = vadd.f32 %v454, %v621
        %v696 = vadd.f32 %v455, %v626
        %v697 = vadd.f32 %v456, %v631
        %v698 = vadd.f32 %v457, %v636
        %v699 = vadd.f32 %v458, %v641
        %v700 = vadd.f32 %v459, %v646
        %v701 = vadd.f32 %v460, %v651
        %v702 = vadd.f32 %v461, %v656
        %v703 = vadd.f32 %v462, %v661
        %v704 = vadd.f32 %v463, %v666
        %v705 = vadd.f32 %v464, %v671
        %v706 = vadd.f32 %v465, %v676
        %v707 = vadd.f32 %v466, %v681
        %v708 = vadd.f32 %v467, %v686
        %v709 = vadd.f32 %v468, %v691
        %710 = vst [vmem:[#allocation2] sm:$0xff] %v694
        %711 = vst [vmem:[#allocation2 + $0x8] sm:$0xff] %v695
        %712 = vst [vmem:[#allocation2 + $0x10] sm:$0xff] %v696
        %713 = vst [vmem:[#allocation2 + $0x18] sm:$0xff] %v697
        %714 = vst [vmem:[#allocation2 + $0x20] sm:$0xff] %v698
        %715 = vst [vmem:[#allocation2 + $0x28] sm:$0xff] %v699
        %716 = vst [vmem:[#allocation2 + $0x30] sm:$0xff] %v700
        %717 = vst [vmem:[#allocation2 + $0x38] sm:$0xff] %v701
        %718 = vst [vmem:[#allocation2 + $0x40] sm:$0xff] %v702
        %719 = vst [vmem:[#allocation2 + $0x48] sm:$0xff] %v703
        %720 = vst [vmem:[#allocation2 + $0x50] sm:$0xff] %v704
        %721 = vst [vmem:[#allocation2 + $0x58] sm:$0xff] %v705
        %722 = vst [vmem:[#allocation2 + $0x60] sm:$0xff] %v706
        %723 = vst [vmem:[#allocation2 + $0x68] sm:$0xff] %v707
        %724 = vst [vmem:[#allocation2 + $0x70] sm:$0xff] %v708
        %725 = vst [vmem:[#allocation2 + $0x78] sm:$0xff] %v709
        %p726 = scmp.eq.s32.totalorder %s22, 1
        // Predicated region
        $region87: #{graphsage_forward.3} parent=77 // pred_check
          %p727 = pneg %p726
        $region88: #{graphsage_forward.3} parent=77 // pred_check_branch
          %729 = sbr.rel (%p727) target = $region90
        $region89: #{graphsage_forward.3} parent=77 // pred_region
          %v730 = vld [vmem:[#allocation2] sm:$0xff]
          %v731 = vld [vmem:[#allocation2 + $0x8] sm:$0xff]
          %v732 = vld [vmem:[#allocation2 + $0x10] sm:$0xff]
          %v733 = vld [vmem:[#allocation2 + $0x18] sm:$0xff]
          %v734 = vld [vmem:[#allocation2 + $0x20] sm:$0xff]
          %v735 = vld [vmem:[#allocation2 + $0x28] sm:$0xff]
          %v736 = vld [vmem:[#allocation2 + $0x30] sm:$0xff]
          %v737 = vld [vmem:[#allocation2 + $0x38] sm:$0xff]
          %v738 = vld [vmem:[#allocation2 + $0x40] sm:$0xff]
          %v739 = vld [vmem:[#allocation2 + $0x48] sm:$0xff]
          %v740 = vld [vmem:[#allocation2 + $0x50] sm:$0xff]
          %v741 = vld [vmem:[#allocation2 + $0x58] sm:$0xff]
          %v742 = vld [vmem:[#allocation2 + $0x60] sm:$0xff]
          %v743 = vld [vmem:[#allocation2 + $0x68] sm:$0xff]
          %v744 = vld [vmem:[#allocation2 + $0x70] sm:$0xff]
          %v745 = vld [vmem:[#allocation2 + $0x78] sm:$0xff]
          %v746 = vld [vmem:[%s425] sm:$0xff]
          %v747 = vld [vmem:[%s425 + $0x8] sm:$0xff]
          %v748 = vld [vmem:[%s425 + $0x10] sm:$0xff]
          %v749 = vld [vmem:[%s425 + $0x18] sm:$0xff]
          %v750 = vld [vmem:[%s425 + $0x20] sm:$0xff]
          %v751 = vld [vmem:[%s425 + $0x28] sm:$0xff]
          %v752 = vld [vmem:[%s425 + $0x30] sm:$0xff]
          %v753 = vld [vmem:[%s425 + $0x38] sm:$0xff]
          %v754 = vld [vmem:[%s425 + $0x40] sm:$0xff]
          %v755 = vld [vmem:[%s425 + $0x48] sm:$0xff]
          %v756 = vld [vmem:[%s425 + $0x50] sm:$0xff]
          %v757 = vld [vmem:[%s425 + $0x58] sm:$0xff]
          %v758 = vld [vmem:[%s425 + $0x60] sm:$0xff]
          %v759 = vld [vmem:[%s425 + $0x68] sm:$0xff]
          %v760 = vld [vmem:[%s425 + $0x70] sm:$0xff]
          %v761 = vld [vmem:[%s425 + $0x78] sm:$0xff]
          %763 = vset.pattern.permute.xlu0 0
          %764 = vperm.xlu0 %763, %v746
          %v765 = vpop.permute.xlu0 %764
          %768 = vset.pattern.permute.xlu0 0
          %769 = vperm.xlu0 %768, %v747
          %v770 = vpop.permute.xlu0 %769
          %773 = vset.pattern.permute.xlu0 0
          %774 = vperm.xlu0 %773, %v748
          %v775 = vpop.permute.xlu0 %774
          %778 = vset.pattern.permute.xlu0 0
          %779 = vperm.xlu0 %778, %v749
          %v780 = vpop.permute.xlu0 %779
          %783 = vset.pattern.permute.xlu0 0
          %784 = vperm.xlu0 %783, %v750
          %v785 = vpop.permute.xlu0 %784
          %788 = vset.pattern.permute.xlu0 0
          %789 = vperm.xlu0 %788, %v751
          %v790 = vpop.permute.xlu0 %789
          %793 = vset.pattern.permute.xlu0 0
          %794 = vperm.xlu0 %793, %v752
          %v795 = vpop.permute.xlu0 %794
          %798 = vset.pattern.permute.xlu0 0
          %799 = vperm.xlu0 %798, %v753
          %v800 = vpop.permute.xlu0 %799
          %803 = vset.pattern.permute.xlu0 0
          %804 = vperm.xlu0 %803, %v754
          %v805 = vpop.permute.xlu0 %804
          %808 = vset.pattern.permute.xlu0 0
          %809 = vperm.xlu0 %808, %v755
          %v810 = vpop.permute.xlu0 %809
          %813 = vset.pattern.permute.xlu0 0
          %814 = vperm.xlu0 %813, %v756
          %v815 = vpop.permute.xlu0 %814
          %818 = vset.pattern.permute.xlu0 0
          %819 = vperm.xlu0 %818, %v757
          %v820 = vpop.permute.xlu0 %819
          %823 = vset.pattern.permute.xlu0 0
          %824 = vperm.xlu0 %823, %v758
          %v825 = vpop.permute.xlu0 %824
          %828 = vset.pattern.permute.xlu0 0
          %829 = vperm.xlu0 %828, %v759
          %v830 = vpop.permute.xlu0 %829
          %833 = vset.pattern.permute.xlu0 0
          %834 = vperm.xlu0 %833, %v760
          %v835 = vpop.permute.xlu0 %834
          %838 = vset.pattern.permute.xlu0 0
          %839 = vperm.xlu0 %838, %v761
          %v840 = vpop.permute.xlu0 %839
          %v842 = vmul.f32 %v730, %v765
          %v843 = vmul.f32 %v731, %v770
          %v844 = vmul.f32 %v732, %v775
          %v845 = vmul.f32 %v733, %v780
          %v846 = vmul.f32 %v734, %v785
          %v847 = vmul.f32 %v735, %v790
          %v848 = vmul.f32 %v736, %v795
          %v849 = vmul.f32 %v737, %v800
          %v850 = vmul.f32 %v738, %v805
          %v851 = vmul.f32 %v739, %v810
          %v852 = vmul.f32 %v740, %v815
          %v853 = vmul.f32 %v741, %v820
          %v854 = vmul.f32 %v742, %v825
          %v855 = vmul.f32 %v743, %v830
          %v856 = vmul.f32 %v744, %v835
          %v857 = vmul.f32 %v745, %v840
          %v858 = vld [vmem:[%s419] sm:$0xff]
          %v859 = vld [vmem:[%s419 + $0x8] sm:$0xff]
          %v860 = vld [vmem:[%s419 + $0x10] sm:$0xff]
          %v861 = vld [vmem:[%s419 + $0x18] sm:$0xff]
          %v862 = vld [vmem:[%s419 + $0x20] sm:$0xff]
          %v863 = vld [vmem:[%s419 + $0x28] sm:$0xff]
          %v864 = vld [vmem:[%s419 + $0x30] sm:$0xff]
          %v865 = vld [vmem:[%s419 + $0x38] sm:$0xff]
          %v866 = vld [vmem:[%s419 + $0x40] sm:$0xff]
          %v867 = vld [vmem:[%s419 + $0x48] sm:$0xff]
          %v868 = vld [vmem:[%s419 + $0x50] sm:$0xff]
          %v869 = vld [vmem:[%s419 + $0x58] sm:$0xff]
          %v870 = vld [vmem:[%s419 + $0x60] sm:$0xff]
          %v871 = vld [vmem:[%s419 + $0x68] sm:$0xff]
          %v872 = vld [vmem:[%s419 + $0x70] sm:$0xff]
          %v873 = vld [vmem:[%s419 + $0x78] sm:$0xff]
          %874 = vst [vmem:[#allocation3] sm:$0xff] %v858
          %875 = vst [vmem:[#allocation3 + $0x10] sm:$0xff] %v859
          %876 = vst [vmem:[#allocation3 + $0x20] sm:$0xff] %v860
          %877 = vst [vmem:[#allocation3 + $0x30] sm:$0xff] %v861
          %878 = vst [vmem:[#allocation3 + $0x40] sm:$0xff] %v862
          %879 = vst [vmem:[#allocation3 + $0x50] sm:$0xff] %v863
          %880 = vst [vmem:[#allocation3 + $0x60] sm:$0xff] %v864
          %881 = vst [vmem:[#allocation3 + $0x70] sm:$0xff] %v865
          %882 = vst [vmem:[#allocation3 + $0x80] sm:$0xff] %v866
          %883 = vst [vmem:[#allocation3 + $0x90] sm:$0xff] %v867
          %884 = vst [vmem:[#allocation3 + $0xa0] sm:$0xff] %v868
          %885 = vst [vmem:[#allocation3 + $0xb0] sm:$0xff] %v869
          %886 = vst [vmem:[#allocation3 + $0xc0] sm:$0xff] %v870
          %887 = vst [vmem:[#allocation3 + $0xd0] sm:$0xff] %v871
          %888 = vst [vmem:[#allocation3 + $0xe0] sm:$0xff] %v872
          %889 = vst [vmem:[#allocation3 + $0xf0] sm:$0xff] %v873
          %890 = vst [vmem:[#allocation3 + $0x8] sm:$0xff] %v842
          %891 = vst [vmem:[#allocation3 + $0x18] sm:$0xff] %v843
          %892 = vst [vmem:[#allocation3 + $0x28] sm:$0xff] %v844
          %893 = vst [vmem:[#allocation3 + $0x38] sm:$0xff] %v845
          %894 = vst [vmem:[#allocation3 + $0x48] sm:$0xff] %v846
          %895 = vst [vmem:[#allocation3 + $0x58] sm:$0xff] %v847
          %896 = vst [vmem:[#allocation3 + $0x68] sm:$0xff] %v848
          %897 = vst [vmem:[#allocation3 + $0x78] sm:$0xff] %v849
          %898 = vst [vmem:[#allocation3 + $0x88] sm:$0xff] %v850
          %899 = vst [vmem:[#allocation3 + $0x98] sm:$0xff] %v851
          %900 = vst [vmem:[#allocation3 + $0xa8] sm:$0xff] %v852
          %901 = vst [vmem:[#allocation3 + $0xb8] sm:$0xff] %v853
          %902 = vst [vmem:[#allocation3 + $0xc8] sm:$0xff] %v854
          %903 = vst [vmem:[#allocation3 + $0xd8] sm:$0xff] %v855
          %904 = vst [vmem:[#allocation3 + $0xe8] sm:$0xff] %v856
          %905 = vst [vmem:[#allocation3 + $0xf8] sm:$0xff] %v857
          %v906 = vld [vmem:[#allocation3] sm:$0xff]
          %v907 = vld [vmem:[#allocation3 + $0x8] sm:$0xff]
          %v908 = vld [vmem:[#allocation3 + $0x10] sm:$0xff]
          %v909 = vld [vmem:[#allocation3 + $0x18] sm:$0xff]
          %v910 = vld [vmem:[#allocation3 + $0x20] sm:$0xff]
          %v911 = vld [vmem:[#allocation3 + $0x28] sm:$0xff]
          %v912 = vld [vmem:[#allocation3 + $0x30] sm:$0xff]
          %v913 = vld [vmem:[#allocation3 + $0x38] sm:$0xff]
          %v914 = vld [vmem:[#allocation3 + $0x40] sm:$0xff]
          %v915 = vld [vmem:[#allocation3 + $0x48] sm:$0xff]
          %v916 = vld [vmem:[#allocation3 + $0x50] sm:$0xff]
          %v917 = vld [vmem:[#allocation3 + $0x58] sm:$0xff]
          %v918 = vld [vmem:[#allocation3 + $0x60] sm:$0xff]
          %v919 = vld [vmem:[#allocation3 + $0x68] sm:$0xff]
          %v920 = vld [vmem:[#allocation3 + $0x70] sm:$0xff]
          %v921 = vld [vmem:[#allocation3 + $0x78] sm:$0xff]
          %v922 = vld [vmem:[#allocation3 + $0x80] sm:$0xff]
          %v923 = vld [vmem:[#allocation3 + $0x88] sm:$0xff]
          %v924 = vld [vmem:[#allocation3 + $0x90] sm:$0xff]
          %v925 = vld [vmem:[#allocation3 + $0x98] sm:$0xff]
          %v926 = vld [vmem:[#allocation3 + $0xa0] sm:$0xff]
          %v927 = vld [vmem:[#allocation3 + $0xa8] sm:$0xff]
          %v928 = vld [vmem:[#allocation3 + $0xb0] sm:$0xff]
          %v929 = vld [vmem:[#allocation3 + $0xb8] sm:$0xff]
          %v930 = vld [vmem:[#allocation3 + $0xc0] sm:$0xff]
          %v931 = vld [vmem:[#allocation3 + $0xc8] sm:$0xff]
          %v932 = vld [vmem:[#allocation3 + $0xd0] sm:$0xff]
          %v933 = vld [vmem:[#allocation3 + $0xd8] sm:$0xff]
          %v934 = vld [vmem:[#allocation3 + $0xe0] sm:$0xff]
          %v935 = vld [vmem:[#allocation3 + $0xe8] sm:$0xff]
          %v936 = vld [vmem:[#allocation3 + $0xf0] sm:$0xff]
          %v937 = vld [vmem:[#allocation3 + $0xf8] sm:$0xff]
          %v938 = vld [vmem:[%s4] sm:$0xff]
          %v939 = vld [vmem:[%s4 + $0x8] sm:$0xff]
          %v940 = vld [vmem:[%s4 + $0x10] sm:$0xff]
          %v941 = vld [vmem:[%s4 + $0x18] sm:$0xff]
          %v942 = vld [vmem:[%s4 + $0x20] sm:$0xff]
          %v943 = vld [vmem:[%s4 + $0x28] sm:$0xff]
          %v944 = vld [vmem:[%s4 + $0x30] sm:$0xff]
          %v945 = vld [vmem:[%s4 + $0x38] sm:$0xff]
          %v946 = vld [vmem:[%s4 + $0x40] sm:$0xff]
          %v947 = vld [vmem:[%s4 + $0x48] sm:$0xff]
          %v948 = vld [vmem:[%s4 + $0x50] sm:$0xff]
          %v949 = vld [vmem:[%s4 + $0x58] sm:$0xff]
          %v950 = vld [vmem:[%s4 + $0x60] sm:$0xff]
          %v951 = vld [vmem:[%s4 + $0x68] sm:$0xff]
          %v952 = vld [vmem:[%s4 + $0x70] sm:$0xff]
          %v953 = vld [vmem:[%s4 + $0x78] sm:$0xff]
          %v954 = vld [vmem:[%s4 + $0x80] sm:$0xff]
          %v955 = vld [vmem:[%s4 + $0x88] sm:$0xff]
          %v956 = vld [vmem:[%s4 + $0x90] sm:$0xff]
          %v957 = vld [vmem:[%s4 + $0x98] sm:$0xff]
          %v958 = vld [vmem:[%s4 + $0xa0] sm:$0xff]
          %v959 = vld [vmem:[%s4 + $0xa8] sm:$0xff]
          %v960 = vld [vmem:[%s4 + $0xb0] sm:$0xff]
          %v961 = vld [vmem:[%s4 + $0xb8] sm:$0xff]
          %v962 = vld [vmem:[%s4 + $0xc0] sm:$0xff]
          %v963 = vld [vmem:[%s4 + $0xc8] sm:$0xff]
          %v964 = vld [vmem:[%s4 + $0xd0] sm:$0xff]
          %v965 = vld [vmem:[%s4 + $0xd8] sm:$0xff]
          %v966 = vld [vmem:[%s4 + $0xe0] sm:$0xff]
          %v967 = vld [vmem:[%s4 + $0xe8] sm:$0xff]
          %v968 = vld [vmem:[%s4 + $0xf0] sm:$0xff]
          %v969 = vld [vmem:[%s4 + $0xf8] sm:$0xff]
          %v970 = vld [vmem:[%s5] sm:$0x1]
          %v972 = vlaneseq
          %v973 = vshrl.u32 %v972, 7
          %v974 = vsub.s32 0, %v973
          %v975 = vrot.slane %v970, %v974
          %977 = vmatprep.subr.mxu0 0.0
          %978 = vmatpush1.msra.mxu0 %v938
          %979 = vmatprep.subr.mxu0 0.0
          %980 = vmatpush1.msra.mxu0 %v939
          %981 = vmatprep.subr.mxu0 0.0
          %982 = vmatpush1.msra.mxu0 %v940
          %983 = vmatprep.subr.mxu0 0.0
          %984 = vmatpush1.msra.mxu0 %v941
          %985 = vmatprep.subr.mxu0 0.0
          %986 = vmatpush1.msra.mxu0 %v942
          %987 = vmatprep.subr.mxu0 0.0
          %988 = vmatpush1.msra.mxu0 %v943
          %989 = vmatprep.subr.mxu0 0.0
          %990 = vmatpush1.msra.mxu0 %v944
          %991 = vmatprep.subr.mxu0 0.0
          %992 = vmatpush1.msra.mxu0 %v945
          %993 = vmatprep.subr.mxu0 0.0
          %994 = vmatpush1.msra.mxu0 %v946
          %995 = vmatprep.subr.mxu0 0.0
          %996 = vmatpush1.msra.mxu0 %v947
          %997 = vmatprep.subr.mxu0 0.0
          %998 = vmatpush1.msra.mxu0 %v948
          %999 = vmatprep.subr.mxu0 0.0
          %1000 = vmatpush1.msra.mxu0 %v949
          %1001 = vmatprep.subr.mxu0 0.0
          %1002 = vmatpush1.msra.mxu0 %v950
          %1003 = vmatprep.subr.mxu0 0.0
          %1004 = vmatpush1.msra.mxu0 %v951
          %1005 = vmatprep.subr.mxu0 0.0
          %1006 = vmatpush1.msra.mxu0 %v952
          %1007 = vmatprep.subr.mxu0 0.0
          %1008 = vmatpush1.msra.mxu0 %v953
          %1009 = vmatprep.subr.mxu0 0.0
          %1010 = vmatpush1.msra.mxu0 %v954
          %1011 = vmatprep.subr.mxu0 0.0
          %1012 = vmatpush1.msra.mxu0 %v955
          %1013 = vmatprep.subr.mxu0 0.0
          %1014 = vmatpush1.msra.mxu0 %v956
          %1015 = vmatprep.subr.mxu0 0.0
          %1016 = vmatpush1.msra.mxu0 %v957
          %1017 = vmatprep.subr.mxu0 0.0
          %1018 = vmatpush1.msra.mxu0 %v958
          %1019 = vmatprep.subr.mxu0 0.0
          %1020 = vmatpush1.msra.mxu0 %v959
          %1021 = vmatprep.subr.mxu0 0.0
          %1022 = vmatpush1.msra.mxu0 %v960
          %1023 = vmatprep.subr.mxu0 0.0
          %1024 = vmatpush1.msra.mxu0 %v961
          %1025 = vmatprep.subr.mxu0 0.0
          %1026 = vmatpush1.msra.mxu0 %v962
          %1027 = vmatprep.subr.mxu0 0.0
          %1028 = vmatpush1.msra.mxu0 %v963
          %1029 = vmatprep.subr.mxu0 0.0
          %1030 = vmatpush1.msra.mxu0 %v964
          %1031 = vmatprep.subr.mxu0 0.0
          %1032 = vmatpush1.msra.mxu0 %v965
          %1033 = vmatprep.subr.mxu0 0.0
          %1034 = vmatpush1.msra.mxu0 %v966
          %1035 = vmatprep.subr.mxu0 0.0
          %1036 = vmatpush1.msra.mxu0 %v967
          %1037 = vmatprep.subr.mxu0 0.0
          %1038 = vmatpush1.msra.mxu0 %v968
          %1039 = vmatprep.subr.mxu0 0.0
          %1040 = vmatpush1.msra.mxu0 %v969
          %1041 = vmatprep.mubr.f32.mxu0 %v907
          %1042 = vmatmul.mubr.f32.gmra.mrb[0].mxu0 %v906
          %v1043 = vpop.f32.mrb[0].mxu0
          %v1044 = vadd.f32 %v975, %v1043
          %v1045 = vpop.f32.mrb[0].mxu0
          %1046 = vmatprep.mubr.f32.mxu0 %v909
          %1047 = vmatmul.mubr.f32.gmra.mrb[0].mxu0 %v908
          %v1048 = vpop.f32.mrb[0].mxu0
          %v1049 = vadd.f32 %v975, %v1048
          %v1050 = vpop.f32.mrb[0].mxu0
          %1051 = vmatprep.mubr.f32.mxu0 %v911
          %1052 = vmatmul.mubr.f32.gmra.mrb[0].mxu0 %v910
          %v1053 = vpop.f32.mrb[0].mxu0
          %v1054 = vadd.f32 %v975, %v1053
          %v1055 = vpop.f32.mrb[0].mxu0
          %1056 = vmatprep.mubr.f32.mxu0 %v913
          %1057 = vmatmul.mubr.f32.gmra.mrb[0].mxu0 %v912
          %v1058 = vpop.f32.mrb[0].mxu0
          %v1059 = vadd.f32 %v975, %v1058
          %v1060 = vpop.f32.mrb[0].mxu0
          %1061 = vmatprep.mubr.f32.mxu0 %v915
          %1062 = vmatmul.mubr.f32.gmra.mrb[0].mxu0 %v914
          %v1063 = vpop.f32.mrb[0].mxu0
          %v1064 = vadd.f32 %v975, %v1063
          %v1065 = vpop.f32.mrb[0].mxu0
          %1066 = vmatprep.mubr.f32.mxu0 %v917
          %1067 = vmatmul.mubr.f32.gmra.mrb[0].mxu0 %v916
          %v1068 = vpop.f32.mrb[0].mxu0
          %v1069 = vadd.f32 %v975, %v1068
          %v1070 = vpop.f32.mrb[0].mxu0
          %1071 = vmatprep.mubr.f32.mxu0 %v919
          %1072 = vmatmul.mubr.f32.gmra.mrb[0].mxu0 %v918
          %v1073 = vpop.f32.mrb[0].mxu0
          %v1074 = vadd.f32 %v975, %v1073
          %v1075 = vpop.f32.mrb[0].mxu0
          %1076 = vmatprep.mubr.f32.mxu0 %v921
          %1077 = vmatmul.mubr.f32.gmra.mrb[0].mxu0 %v920
          %v1078 = vpop.f32.mrb[0].mxu0
          %v1079 = vadd.f32 %v975, %v1078
          %v1080 = vpop.f32.mrb[0].mxu0
          %1081 = vmatprep.mubr.f32.mxu0 %v923
          %1082 = vmatmul.mubr.f32.gmra.mrb[0].mxu0 %v922
          %v1083 = vpop.f32.mrb[0].mxu0
          %v1084 = vadd.f32 %v975, %v1083
          %v1085 = vpop.f32.mrb[0].mxu0
          %1086 = vmatprep.mubr.f32.mxu0 %v925
          %1087 = vmatmul.mubr.f32.gmra.mrb[0].mxu0 %v924
          %v1088 = vpop.f32.mrb[0].mxu0
          %v1089 = vadd.f32 %v975, %v1088
          %v1090 = vpop.f32.mrb[0].mxu0
          %1091 = vmatprep.mubr.f32.mxu0 %v927
          %1092 = vmatmul.mubr.f32.gmra.mrb[0].mxu0 %v926
          %v1093 = vpop.f32.mrb[0].mxu0
          %v1094 = vadd.f32 %v975, %v1093
          %v1095 = vpop.f32.mrb[0].mxu0
          %1096 = vmatprep.mubr.f32.mxu0 %v929
          %1097 = vmatmul.mubr.f32.gmra.mrb[0].mxu0 %v928
          %v1098 = vpop.f32.mrb[0].mxu0
          %v1099 = vadd.f32 %v975, %v1098
          %v1100 = vpop.f32.mrb[0].mxu0
          %1101 = vmatprep.mubr.f32.mxu0 %v931
          %1102 = vmatmul.mubr.f32.gmra.mrb[0].mxu0 %v930
          %v1103 = vpop.f32.mrb[0].mxu0
          %v1104 = vadd.f32 %v975, %v1103
          %v1105 = vpop.f32.mrb[0].mxu0
          %1106 = vmatprep.mubr.f32.mxu0 %v933
          %1107 = vmatmul.mubr.f32.gmra.mrb[0].mxu0 %v932
          %v1108 = vpop.f32.mrb[0].mxu0
          %v1109 = vadd.f32 %v975, %v1108
          %v1110 = vpop.f32.mrb[0].mxu0
          %1111 = vmatprep.mubr.f32.mxu0 %v935
          %1112 = vmatmul.mubr.f32.gmra.mrb[0].mxu0 %v934
          %v1113 = vpop.f32.mrb[0].mxu0
          %v1114 = vadd.f32 %v975, %v1113
          %v1115 = vpop.f32.mrb[0].mxu0
          %1116 = vmatprep.mubr.f32.mxu0 %v937
          %1117 = vmatmul.mubr.f32.gmra.mrb[0].mxu0 %v936
          %v1118 = vpop.f32.mrb[0].mxu0
          %v1119 = vadd.f32 %v975, %v1118
          %v1120 = vpop.f32.mrb[0].mxu0
          %1121 = vdwg.mxu0
          %1122 = vst [vmem:[%s431] sm:$0xff] %v1044
          %1123 = vst [vmem:[%s431 + $0x8] sm:$0xff] %v1049
          %1124 = vst [vmem:[%s431 + $0x10] sm:$0xff] %v1054
          %1125 = vst [vmem:[%s431 + $0x18] sm:$0xff] %v1059
          %1126 = vst [vmem:[%s431 + $0x20] sm:$0xff] %v1064
          %1127 = vst [vmem:[%s431 + $0x28] sm:$0xff] %v1069
          %1128 = vst [vmem:[%s431 + $0x30] sm:$0xff] %v1074
          %1129 = vst [vmem:[%s431 + $0x38] sm:$0xff] %v1079
          %1130 = vst [vmem:[%s431 + $0x40] sm:$0xff] %v1084
          %1131 = vst [vmem:[%s431 + $0x48] sm:$0xff] %v1089
          %1132 = vst [vmem:[%s431 + $0x50] sm:$0xff] %v1094
          %1133 = vst [vmem:[%s431 + $0x58] sm:$0xff] %v1099
          %1134 = vst [vmem:[%s431 + $0x60] sm:$0xff] %v1104
          %1135 = vst [vmem:[%s431 + $0x68] sm:$0xff] %v1109
          %1136 = vst [vmem:[%s431 + $0x70] sm:$0xff] %v1114
          %1137 = vst [vmem:[%s431 + $0x78] sm:$0xff] %v1119
        $region90: #{graphsage_forward.3} parent=77 // pred_fallthru
          _
        %s1138 = smul.u32 16, %s21
        %p1139 = scmp.lt.s32.totalorder %s1138, 63
        %s1140 = scalar_select %p1139, %s1138, 63
        %s1141 = smul.addr %s1140, 8
        %s1142 = scalar_lea.vmem %s6, %s1141
        // Predicated region
        $region91: #{graphsage_forward.3} parent=77 // pred_check
          %p1143 = pneg %p195
        $region92: #{graphsage_forward.3} parent=77 // pred_check_branch
          %1145 = sbr.rel (%p1143) target = $region94
        $region93: #{graphsage_forward.3} parent=77 // pred_region
          %s1146 = smul.u32 16, %s21
        $region94: #{graphsage_forward.3} parent=77 // pred_fallthru
          _
      $region78: #{graphsage_forward.3} parent=5 // pred_fallthru
        _
      %p1147 = scmp.le.s32.totalorder 2, %s12
      // Predicated region
      $region95: #{graphsage_forward.3} parent=5 // pred_check
        %p1148 = pneg %p1147
      $region96: #{graphsage_forward.3} parent=5 // pred_check_branch
        %1150 = sbr.rel (%p1148) target = $region98
      $region97: #{graphsage_forward.3} parent=5 // pred_region
        %s1151 = ssub.s32 %s12, 2
        // Predicated region
        $region99: #{graphsage_forward.3} parent=97 // pred_check
          %p1152 = pneg %p201
        $region100: #{graphsage_forward.3} parent=97 // pred_check_branch
          %1154 = sbr.rel (%p1152) target = $region102
        $region101: #{graphsage_forward.3} parent=97 // pred_region
          %s1155 = smul.u32 16, %s23
          %p1156 = scmp.lt.s32.totalorder %s1155, 63
          %s1157 = scalar_select %p1156, %s1155, 63
          %s1158 = smul.addr %s1157, 8
          %s1159 = scalar_lea.vmem %s6, %s1158
        $region102: #{graphsage_forward.3} parent=97 // pred_fallthru
          _
      $region98: #{graphsage_forward.3} parent=5 // pred_fallthru
        _
    $region6: #{graphsage_forward.3} parent=1 // loop_footer
      %s16 = sadd.s32 1, %s12
    $region7: #{graphsage_forward.3} parent=1 // loop_footer_branch
      %11 = sbr.rel target = $region3
    $region8: #{graphsage_forward.3} parent=1 // loop_exit
      _

</llo_original>
